<compile_context>
chip_gen: v6e
topology: v6e:2x2x1
jax: 0.10.0
libtpu: 0.0.40
codegen_flags: <defaults>
</compile_context>

<pallas_src>
import jax
import jax.numpy as jnp
from jax.experimental import pallas as pl
from jax.experimental.pallas import tpu as pltpu

_MAX_INFLIGHT_DMAS = 4           # max concurrent HBM->HBM chunk copies
_MIN_BYTES_PER_CHUNK = 1 << 20   # don't split arrays below ~1 MiB per chunk


def identity(x: jax.Array) -> jax.Array:
    """nn.Identity at the XLA level: free — no kernel, no HBM traffic."""
    return x


def _chunk_bounds(lead: int, n_chunks: int):
    """Split range [0, lead) into n_chunks contiguous (start, size) pieces."""
    base, rem = divmod(lead, n_chunks)
    bounds, start = [], 0
    for c in range(n_chunks):
        size = base + (1 if c < rem else 0)
        if size > 0:
            bounds.append((start, size))
        start += size
    return bounds


def _make_identity_dma_kernel(chunk_bounds):
    """Kernel: direct HBM->HBM copy, chunked along axis 0, all DMAs in flight."""
    whole = len(chunk_bounds) == 1

    def kernel(x_hbm, o_hbm, sem):
        copies = []
        for c, (start, size) in enumerate(chunk_bounds):
            if whole:
                src, dst = x_hbm, o_hbm
            else:
                src = x_hbm.at[pl.ds(start, size)]
                dst = o_hbm.at[pl.ds(start, size)]
            cp = pltpu.make_async_copy(src, dst, sem.at[c])
            cp.start()
            copies.append(cp)
        for cp in copies:
            cp.wait()

    return kernel


def identity_pallas(x: jax.Array) -> jax.Array:
    """Explicit-copy Pallas TPU implementation of nn.Identity (y = x)."""
    if x.ndim == 0 or x.size == 0:
        # Nothing to DMA over; Identity is a pure no-op.
        return x

    itemsize = jnp.dtype(x.dtype).itemsize
    total_bytes = x.size * itemsize
    lead = x.shape[0]
    n_chunks = max(1, min(_MAX_INFLIGHT_DMAS, lead,
                          total_bytes // _MIN_BYTES_PER_CHUNK))
    bounds = _chunk_bounds(lead, n_chunks)

    return pl.pallas_call(
        _make_identity_dma_kernel(bounds),
        out_shape=jax.ShapeDtypeStruct(x.shape, x.dtype),
        in_specs=[pl.BlockSpec(memory_space=pl.ANY)],
        out_specs=pl.BlockSpec(memory_space=pl.ANY),
        scratch_shapes=[pltpu.SemaphoreType.DMA((len(bounds),))],
    )(x)


if __name__ == "__main__":
    key = jax.random.PRNGKey(0)
    k0, k1, k2, k3 = jax.random.split(key, 4)

    # Small NCHW-like activation consistent with the vision-transformer module.
    x = jax.random.normal(k0, (2, 4, 16, 16), dtype=jnp.float32)
    y = identity_pallas(x)
    jax.block_until_ready(y)
    assert y.shape == x.shape, (y.shape, x.shape)
    assert y.dtype == x.dtype, (y.dtype, x.dtype)
    assert bool(jnp.all(y == x)), "Identity kernel output mismatch (f32)"

    # Ragged / odd shape — no pad, no reshape, no slice anywhere in the wrapper.
    x_odd = jax.random.normal(k1, (3, 5, 7), dtype=jnp.float32)
    y_odd = identity_pallas(x_odd)
    jax.block_until_ready(y_odd)
    assert y_odd.shape == x_odd.shape and bool(jnp.all(y_odd == x_odd))

    # Packed dtype.
    x_bf16 = jax.random.normal(k2, (2, 8, 32), dtype=jnp.bfloat16)
    y_bf16 = identity_pallas(x_bf16)
    jax.block_until_ready(y_bf16)
    assert y_bf16.dtype == jnp.bfloat16 and bool(jnp.all(y_bf16 == x_bf16))

    # ViT-sized activation (~4.6 MiB) exercising the multi-DMA-in-flight path.
    x_vit = jax.random.normal(k3, (8, 197, 768), dtype=jnp.float32)
    y_vit = identity_pallas(x_vit)
    jax.block_until_ready(y_vit)
    assert bool(jnp.all(y_vit == x_vit))

    # Zero-cost path (the real nn.Identity equivalent).
    assert identity(x) is x

    print("KERNEL_OK")
</pallas_src>

<mosaic_0001>
module attributes {stable_mosaic.version = 11 : i64} {
  func.func @kernel(%arg0: memref<2x4x16x16xf32, #tpu.memory_space<any>>, %arg1: memref<2x4x16x16xf32, #tpu.memory_space<any>>, %arg2: memref<1x!tpu.dma_semaphore, #tpu.memory_space<semaphore_mem>>) attributes {dimension_semantics = [], scalar_prefetch = 0 : i64, scratch_operands = 1 : i64, tpu.core_type = #tpu.core_type<tc>} {
    %c0_i32 = arith.constant 0 : i32
    %0 = tpu.memref_slice %arg2[%c0_i32] : memref<1x!tpu.dma_semaphore, #tpu.memory_space<semaphore_mem>> -> memref<1x!tpu.dma_semaphore, #tpu.memory_space<semaphore_mem>>
    %1 = tpu.memref_squeeze %0 : memref<1x!tpu.dma_semaphore, #tpu.memory_space<semaphore_mem>> -> memref<!tpu.dma_semaphore, #tpu.memory_space<semaphore_mem>>
    tpu.enqueue_dma source(%arg0 : memref<2x4x16x16xf32, #tpu.memory_space<any>>) target(%arg1 : memref<2x4x16x16xf32, #tpu.memory_space<any>>) target_semaphore(%1 : memref<!tpu.dma_semaphore, #tpu.memory_space<semaphore_mem>>)
    %c0_i32_0 = arith.constant 0 : i32
    %2 = tpu.memref_slice %arg2[%c0_i32_0] : memref<1x!tpu.dma_semaphore, #tpu.memory_space<semaphore_mem>> -> memref<1x!tpu.dma_semaphore, #tpu.memory_space<semaphore_mem>>
    %3 = tpu.memref_squeeze %2 : memref<1x!tpu.dma_semaphore, #tpu.memory_space<semaphore_mem>> -> memref<!tpu.dma_semaphore, #tpu.memory_space<semaphore_mem>>
    tpu.wait_dma2 semaphore(%3 : memref<!tpu.dma_semaphore, #tpu.memory_space<semaphore_mem>>) src(%arg0 : memref<2x4x16x16xf32, #tpu.memory_space<any>>) dst(%arg1 : memref<2x4x16x16xf32, #tpu.memory_space<any>>)
    return
  }
}

</mosaic_0001>

<llo_original>
// kernel: tpu_custom_call.1
$region0: #{tpu_custom_call.1}
  #allocation0 [shape = 'u32[]', space=smem, size = 0x4, offset = 0x4, fixed_abs, tag = 'smem constant byte address 0x4 - core index']
  #allocation1 [shape = 'u32[144,128]{1,0:T(1,128)}', space=vmem, size = 0x12000, scoped, tag = 'internal scratch']
  #allocation2 [shape = 's32[1]{0}', space=sflag, size = 0x4, scoped, tag = 'scratch operand']
  #allocation3 [shape = 's32[]', space=sflag, size = 0x4, offset = 0, fixed_abs, tag = 'sflag constant byte address 0x0 - dummy sync flag']
  #allocation4 [shape = 'u32[0]{0}', space=smem, size = 0, offset = 0, fixed_abs, tag = 'smem constant byte address 0x0 - null']
  %s0 = inlined_call_operand.hbm [shape: f32[2,4,16,16], index: 0, kind: input, shape index: {}]
  %s1 = inlined_call_operand.hbm [shape: f32[2,4,16,16], index: 1, kind: output, shape index: {}]
  %s2 = sld [smem:[#allocation0]]
  $region2: #{tpu_custom_call.1} parent=0
    _
  %s4 = ssub.s32 1, %s2
  %s5 = scalar_select 0, %s4, %s2
  %s7 = sshll.u32 1, 14
  %s8 = sxor.u32 4294967295, %s7
  %12 = dma.general %s0, 2048, %s1, [#allocation2], 131072, [#allocation4], 0, 0
  %s13 = smul.u32 2, 4
  %s14 = smul.u32 %s13, 16
  %s15 = smul.u32 %s14, 1
  %s16 = sshll.u32 %s15, 4
  %17 = dma.done [#allocation2], %s16
  %18 = vsyncmov [#allocation2]
  %s19 = vpop.sfrf %18
  %p20 = scmp.eq.s32.totalorder %s19, 0
  %p21 = pneg %p20
  %23 = shalt.err (%p21)

</llo_original>
